<compile_context>
chip_gen: v7x
topology: tpu7x:2x2x1
jax: 0.10.0
libtpu: 0.0.40
codegen_flags: <defaults>
</compile_context>

<pallas_src>
import jax
import jax.numpy as jnp
from jax import lax
from jax.experimental import pallas as pl
from jax.experimental.pallas import tpu as pltpu


def _make_fused_kernel(N, Cin, Cout, H, W, eps):
    """Fused conv3x3 + training-mode BN + ReLU over the whole batch (VMEM-resident)."""
    P = H * W                      # flat spatial extent on the lane axis (multiple of 128 here)
    count = float(N * H * W)       # BN normalizer (biased variance, training mode)

    def kernel(x_ref, w_ref, mask_ref, gamma_ref, beta_ref, o_ref, stk_ref):
        # x_ref:    (N*Cin, P)   flat NCHW input, no padding
        # w_ref:    (Cout, 9*Cin) weights, column index = (kh*3+kw)*Cin + c
        # mask_ref: (9, P)        1.0 where the tap's source pixel is inside the image
        # gamma_ref/beta_ref: (Cout, 1)
        # o_ref:    (N*Cout, P)   final output (also used as VMEM staging for conv values)
        # stk_ref:  (9*Cin, P)    VMEM scratch: stacked shifted operand for the K=9*Cin matmul
        wf = w_ref[...]                                           # (Cout, 9*Cin)
        masks = mask_ref[...]                                     # (9, P)

        s1 = jnp.zeros((Cout, 1), jnp.float32)                    # sum y   per channel
        s2 = jnp.zeros((Cout, 1), jnp.float32)                    # sum y^2 per channel

        for n in range(N):                                        # small, statically unrolled
            xs = x_ref[n * Cin:(n + 1) * Cin, :]                  # (Cin, P)
            # Build the stacked (9*Cin, P) operand: each tap is a lane rotation of the flat
            # image (XLU) with out-of-image positions zeroed by the per-tap mask.
            for kh in range(3):
                for kw in range(3):
                    t = kh * 3 + kw
                    d = (kh - 1) * W + (kw - 1)                   # source offset for this tap
                    s = (-d) % P                                  # roll amount (static)
                    r = xs if s == 0 else pltpu.roll(xs, shift=s, axis=1)
                    stk_ref[t * Cin:(t + 1) * Cin, :] = r * masks[t:t + 1, :]

            # One MXU call per sample: (Cout, 9*Cin) @ (9*Cin, P).
            conv = jnp.dot(wf, stk_ref[...],
                           preferred_element_type=jnp.float32)    # (Cout, P)

            # Stage conv values in the (VMEM-resident) output ref; lane-dense aligned store.
            o_ref[n * Cout:(n + 1) * Cout, :] = conv

            # Fused single-pass BN partials on the tile we just produced.
            s1 = s1 + jnp.sum(conv, axis=1, keepdims=True)
            s2 = s2 + jnp.sum(conv * conv, axis=1, keepdims=True)

        # Tiny (Cout, 1) batch-stat math, then apply affine + ReLU in place.
        mean = s1 * (1.0 / count)
        var = s2 * (1.0 / count) - mean * mean                    # biased variance (training BN)
        scale = gamma_ref[...] * lax.rsqrt(var + eps)             # (Cout, 1)
        shift = beta_ref[...] - mean * scale                      # (Cout, 1)

        for n in range(N):
            y = o_ref[n * Cout:(n + 1) * Cout, :]
            o_ref[n * Cout:(n + 1) * Cout, :] = jnp.maximum(y * scale + shift, 0.0)

    return kernel


def conv_bn_relu(x_nchw, w_oihw, bias, gamma, beta, eps=1e-5):
    """x_nchw: (N, Cin, H, W); w_oihw: (Cout, Cin, 3, 3); returns (N, Cout, H, W).

    NOTE: `bias` is accepted for API parity with nn.Conv2d but is unused: under
    training-mode BatchNorm the per-channel conv bias cancels exactly.
    """
    del bias
    N, Cin, H, W = x_nchw.shape
    Cout = w_oihw.shape[0]
    P = H * W
    K = 9 * Cin

    # Flat NCHW layout: (N*Cin, H*W). Contiguous reshape -> free.
    x2d = x_nchw.astype(jnp.float32).reshape(N * Cin, P)

    # (Cout, Cin, 3, 3) -> (Cout, kh, kw, Cin) -> (Cout, 9*Cin); column = (kh*3+kw)*Cin + c.
    w_flat = jnp.transpose(w_oihw.astype(jnp.float32), (0, 2, 3, 1)).reshape(Cout, K)

    # Per-tap validity masks: 1.0 where (h+kh-1, w+kw-1) lies inside the image.
    p = jnp.arange(P, dtype=jnp.int32)
    hh, ww = p // W, p % W
    mask_rows = []
    for kh in range(3):
        for kw in range(3):
            valid = ((hh + (kh - 1) >= 0) & (hh + (kh - 1) < H) &
                     (ww + (kw - 1) >= 0) & (ww + (kw - 1) < W))
            mask_rows.append(valid.astype(jnp.float32))
    mask_arr = jnp.stack(mask_rows, axis=0)                        # (9, P) constant

    gamma2 = gamma.astype(jnp.float32).reshape(Cout, 1)
    beta2 = beta.astype(jnp.float32).reshape(Cout, 1)

    out2d = pl.pallas_call(
        _make_fused_kernel(N, Cin, Cout, H, W, float(eps)),
        out_shape=jax.ShapeDtypeStruct((N * Cout, P), jnp.float32),
        scratch_shapes=[pltpu.VMEM((K, P), jnp.float32)],
    )(x2d, w_flat, mask_arr, gamma2, beta2)

    # (N*Cout, H*W) -> (N, Cout, H, W): contiguous reshape, free.
    return out2d.reshape(N, Cout, H, W)


def reference_conv_bn_relu(x, w, b, gamma, beta, eps=1e-5):
    y = lax.conv_general_dilated(
        x, w, window_strides=(1, 1), padding=((1, 1), (1, 1)),
        dimension_numbers=("NCHW", "OIHW", "NCHW"))
    y = y + b.reshape(1, -1, 1, 1)
    mean = jnp.mean(y, axis=(0, 2, 3), keepdims=True)
    var = jnp.mean((y - mean) ** 2, axis=(0, 2, 3), keepdims=True)
    y = (y - mean) * lax.rsqrt(var + eps)
    y = y * gamma.reshape(1, -1, 1, 1) + beta.reshape(1, -1, 1, 1)
    return jnp.maximum(y, 0.0)


if __name__ == "__main__":
    key = jax.random.PRNGKey(0)
    k_x, k_w, k_b, k_g, k_be = jax.random.split(key, 5)

    N, Cin, Cout, H, W = 2, 4, 8, 16, 16

    x = jax.random.normal(k_x, (N, Cin, H, W), dtype=jnp.float32)
    # Synthetic parameters (shapes per nn.Conv2d(Cin, Cout, 3) / nn.BatchNorm2d(Cout)).
    w = jax.random.normal(k_w, (Cout, Cin, 3, 3), dtype=jnp.float32) * 0.1
    b = jax.random.normal(k_b, (Cout,), dtype=jnp.float32) * 0.1
    gamma = 1.0 + 0.1 * jax.random.normal(k_g, (Cout,), dtype=jnp.float32)
    beta = 0.1 * jax.random.normal(k_be, (Cout,), dtype=jnp.float32)

    out = jax.block_until_ready(conv_bn_relu(x, w, b, gamma, beta))

    ref = reference_conv_bn_relu(x, w, b, gamma, beta)
    assert out.shape == (N, Cout, H, W)
    err = float(jnp.max(jnp.abs(out - ref)))
    assert jnp.allclose(out, ref, atol=1e-4, rtol=1e-4), err

    print("KERNEL_OK")
</pallas_src>

<mosaic_0001>
module attributes {stable_mosaic.version = 11 : i64} {
  func.func @kernel(%arg0: memref<8x256xf32, #tpu.memory_space<vmem>>, %arg1: memref<8x36xf32, #tpu.memory_space<vmem>>, %arg2: memref<9x256xf32, #tpu.memory_space<vmem>>, %arg3: memref<8x1xf32, #tpu.memory_space<vmem>>, %arg4: memref<8x1xf32, #tpu.memory_space<vmem>>, %arg5: memref<16x256xf32, #tpu.memory_space<vmem>>, %arg6: memref<36x256xf32, #tpu.memory_space<vmem>>) attributes {dimension_semantics = [], scalar_prefetch = 0 : i64, scratch_operands = 1 : i64, tpu.core_type = #tpu.core_type<tc>} {
    %c0 = arith.constant 0 : index
    %c0_0 = arith.constant 0 : index
    %0 = vector.load %arg1[%c0, %c0_0] : memref<8x36xf32, #tpu.memory_space<vmem>>, vector<8x36xf32>
    %c0_1 = arith.constant 0 : index
    %c0_2 = arith.constant 0 : index
    %1 = vector.load %arg2[%c0_1, %c0_2] : memref<9x256xf32, #tpu.memory_space<vmem>>, vector<9x256xf32>
    %cst = arith.constant 0.000000e+00 : f32
    %2 = vector.broadcast %cst : f32 to vector<8x1xf32>
    %cst_3 = arith.constant 0.000000e+00 : f32
    %3 = vector.broadcast %cst_3 : f32 to vector<8x1xf32>
    %c0_4 = arith.constant 0 : index
    %c0_5 = arith.constant 0 : index
    %4 = vector.load %arg0[%c0_4, %c0_5] : memref<8x256xf32, #tpu.memory_space<vmem>>, vector<4x256xf32>
    %c17_i32 = arith.constant 17 : i32
    %5 = tpu.dynamic_rotate %4 by %c17_i32 dim 1 : vector<4x256xf32>, i32 -> vector<4x256xf32>
    %6 = vector.extract_strided_slice %1 {offsets = [0, 0], sizes = [1, 256], strides = [1, 1]} : vector<9x256xf32> to vector<1x256xf32>
    %7 = vector.broadcast %6 : vector<1x256xf32> to vector<4x256xf32>
    %8 = arith.mulf %5, %7 : vector<4x256xf32>
    %c0_6 = arith.constant 0 : index
    %c0_7 = arith.constant 0 : index
    %9 = vector.load %arg6[%c0_6, %c0_7] : memref<36x256xf32, #tpu.memory_space<vmem>>, vector<4x256xf32>
    tpu.vector_store %arg6[%c0_6, %c0_7], %8 {strides = array<i32>} : memref<36x256xf32, #tpu.memory_space<vmem>>, vector<4x256xf32>,
    %c16_i32 = arith.constant 16 : i32
    %10 = tpu.dynamic_rotate %4 by %c16_i32 dim 1 : vector<4x256xf32>, i32 -> vector<4x256xf32>
    %11 = vector.extract_strided_slice %1 {offsets = [1, 0], sizes = [1, 256], strides = [1, 1]} : vector<9x256xf32> to vector<1x256xf32>
    %12 = vector.broadcast %11 : vector<1x256xf32> to vector<4x256xf32>
    %13 = arith.mulf %10, %12 : vector<4x256xf32>
    %c4 = arith.constant 4 : index
    %c0_8 = arith.constant 0 : index
    %14 = vector.load %arg6[%c4, %c0_8] : memref<36x256xf32, #tpu.memory_space<vmem>>, vector<4x256xf32>
    tpu.vector_store %arg6[%c4, %c0_8], %13 {strides = array<i32>} : memref<36x256xf32, #tpu.memory_space<vmem>>, vector<4x256xf32>,
    %c15_i32 = arith.constant 15 : i32
    %15 = tpu.dynamic_rotate %4 by %c15_i32 dim 1 : vector<4x256xf32>, i32 -> vector<4x256xf32>
    %16 = vector.extract_strided_slice %1 {offsets = [2, 0], sizes = [1, 256], strides = [1, 1]} : vector<9x256xf32> to vector<1x256xf32>
    %17 = vector.broadcast %16 : vector<1x256xf32> to vector<4x256xf32>
    %18 = arith.mulf %15, %17 : vector<4x256xf32>
    %c8 = arith.constant 8 : index
    %c0_9 = arith.constant 0 : index
    %19 = vector.load %arg6[%c8, %c0_9] : memref<36x256xf32, #tpu.memory_space<vmem>>, vector<4x256xf32>
    tpu.vector_store %arg6[%c8, %c0_9], %18 {strides = array<i32>} : memref<36x256xf32, #tpu.memory_space<vmem>>, vector<4x256xf32>,
    %c1_i32 = arith.constant 1 : i32
    %20 = tpu.dynamic_rotate %4 by %c1_i32 dim 1 : vector<4x256xf32>, i32 -> vector<4x256xf32>
    %21 = vector.extract_strided_slice %1 {offsets = [3, 0], sizes = [1, 256], strides = [1, 1]} : vector<9x256xf32> to vector<1x256xf32>
    %22 = vector.broadcast %21 : vector<1x256xf32> to vector<4x256xf32>
    %23 = arith.mulf %20, %22 : vector<4x256xf32>
    %c12 = arith.constant 12 : index
    %c0_10 = arith.constant 0 : index
    %24 = vector.load %arg6[%c12, %c0_10] : memref<36x256xf32, #tpu.memory_space<vmem>>, vector<4x256xf32>
    tpu.vector_store %arg6[%c12, %c0_10], %23 {strides = array<i32>} : memref<36x256xf32, #tpu.memory_space<vmem>>, vector<4x256xf32>,
    %25 = vector.extract_strided_slice %1 {offsets = [4, 0], sizes = [1, 256], strides = [1, 1]} : vector<9x256xf32> to vector<1x256xf32>
    %26 = vector.broadcast %25 : vector<1x256xf32> to vector<4x256xf32>
    %27 = arith.mulf %4, %26 : vector<4x256xf32>
    %c16 = arith.constant 16 : index
    %c0_11 = arith.constant 0 : index
    %28 = vector.load %arg6[%c16, %c0_11] : memref<36x256xf32, #tpu.memory_space<vmem>>, vector<4x256xf32>
    tpu.vector_store %arg6[%c16, %c0_11], %27 {strides = array<i32>} : memref<36x256xf32, #tpu.memory_space<vmem>>, vector<4x256xf32>,
    %c255_i32 = arith.constant 255 : i32
    %29 = tpu.dynamic_rotate %4 by %c255_i32 dim 1 : vector<4x256xf32>, i32 -> vector<4x256xf32>
    %30 = vector.extract_strided_slice %1 {offsets = [5, 0], sizes = [1, 256], strides = [1, 1]} : vector<9x256xf32> to vector<1x256xf32>
    %31 = vector.broadcast %30 : vector<1x256xf32> to vector<4x256xf32>
    %32 = arith.mulf %29, %31 : vector<4x256xf32>
    %c20 = arith.constant 20 : index
    %c0_12 = arith.constant 0 : index
    %33 = vector.load %arg6[%c20, %c0_12] : memref<36x256xf32, #tpu.memory_space<vmem>>, vector<4x256xf32>
    tpu.vector_store %arg6[%c20, %c0_12], %32 {strides = array<i32>} : memref<36x256xf32, #tpu.memory_space<vmem>>, vector<4x256xf32>,
    %c241_i32 = arith.constant 241 : i32
    %34 = tpu.dynamic_rotate %4 by %c241_i32 dim 1 : vector<4x256xf32>, i32 -> vector<4x256xf32>
    %35 = vector.extract_strided_slice %1 {offsets = [6, 0], sizes = [1, 256], strides = [1, 1]} : vector<9x256xf32> to vector<1x256xf32>
    %36 = vector.broadcast %35 : vector<1x256xf32> to vector<4x256xf32>
    %37 = arith.mulf %34, %36 : vector<4x256xf32>
    %c24 = arith.constant 24 : index
    %c0_13 = arith.constant 0 : index
    %38 = vector.load %arg6[%c24, %c0_13] : memref<36x256xf32, #tpu.memory_space<vmem>>, vector<4x256xf32>
    tpu.vector_store %arg6[%c24, %c0_13], %37 {strides = array<i32>} : memref<36x256xf32, #tpu.memory_space<vmem>>, vector<4x256xf32>,
    %c240_i32 = arith.constant 240 : i32
    %39 = tpu.dynamic_rotate %4 by %c240_i32 dim 1 : vector<4x256xf32>, i32 -> vector<4x256xf32>
    %40 = vector.extract_strided_slice %1 {offsets = [7, 0], sizes = [1, 256], strides = [1, 1]} : vector<9x256xf32> to vector<1x256xf32>
    %41 = vector.broadcast %40 : vector<1x256xf32> to vector<4x256xf32>
    %42 = arith.mulf %39, %41 : vector<4x256xf32>
    %c28 = arith.constant 28 : index
    %c0_14 = arith.constant 0 : index
    %43 = vector.load %arg6[%c28, %c0_14] : memref<36x256xf32, #tpu.memory_space<vmem>>, vector<4x256xf32>
    tpu.vector_store %arg6[%c28, %c0_14], %42 {strides = array<i32>} : memref<36x256xf32, #tpu.memory_space<vmem>>, vector<4x256xf32>,
    %c239_i32 = arith.constant 239 : i32
    %44 = tpu.dynamic_rotate %4 by %c239_i32 dim 1 : vector<4x256xf32>, i32 -> vector<4x256xf32>
    %45 = vector.extract_strided_slice %1 {offsets = [8, 0], sizes = [1, 256], strides = [1, 1]} : vector<9x256xf32> to vector<1x256xf32>
    %46 = vector.broadcast %45 : vector<1x256xf32> to vector<4x256xf32>
    %47 = arith.mulf %44, %46 : vector<4x256xf32>
    %c32 = arith.constant 32 : index
    %c0_15 = arith.constant 0 : index
    %48 = vector.load %arg6[%c32, %c0_15] : memref<36x256xf32, #tpu.memory_space<vmem>>, vector<4x256xf32>
    tpu.vector_store %arg6[%c32, %c0_15], %47 {strides = array<i32>} : memref<36x256xf32, #tpu.memory_space<vmem>>, vector<4x256xf32>,
    %c0_16 = arith.constant 0 : index
    %c0_17 = arith.constant 0 : index
    %49 = vector.load %arg6[%c0_16, %c0_17] : memref<36x256xf32, #tpu.memory_space<vmem>>, vector<36x256xf32>
    %cst_18 = arith.constant dense<0.000000e+00> : vector<8x256xf32>
    %50 = tpu.matmul %0, %49, %cst_18 {dimension_numbers = #tpu.dot_dimension_numbers<[1], [0], [0], [1], [0, 0, 1, 1], [], []>} : vector<8x36xf32>, vector<36x256xf32>, vector<8x256xf32> -> vector<8x256xf32>
    %c0_19 = arith.constant 0 : index
    %c0_20 = arith.constant 0 : index
    %51 = vector.load %arg5[%c0_19, %c0_20] : memref<16x256xf32, #tpu.memory_space<vmem>>, vector<8x256xf32>
    tpu.vector_store %arg5[%c0_19, %c0_20], %50 {strides = array<i32>} : memref<16x256xf32, #tpu.memory_space<vmem>>, vector<8x256xf32>,
    %cst_21 = arith.constant dense<0.000000e+00> : vector<8xf32>
    %52 = vector.multi_reduction <add>, %50, %cst_21 [1] : vector<8x256xf32> to vector<8xf32>
    %53 = vector.shape_cast %52 : vector<8xf32> to vector<8x1xf32>
    %54 = arith.addf %2, %53 : vector<8x1xf32>
    %55 = arith.mulf %50, %50 : vector<8x256xf32>
    %cst_22 = arith.constant dense<0.000000e+00> : vector<8xf32>
    %56 = vector.multi_reduction <add>, %55, %cst_22 [1] : vector<8x256xf32> to vector<8xf32>
    %57 = vector.shape_cast %56 : vector<8xf32> to vector<8x1xf32>
    %58 = arith.addf %3, %57 : vector<8x1xf32>
    %c4_23 = arith.constant 4 : index
    %c0_24 = arith.constant 0 : index
    %59 = vector.load %arg0[%c4_23, %c0_24] : memref<8x256xf32, #tpu.memory_space<vmem>>, vector<4x256xf32>
    %c17_i32_25 = arith.constant 17 : i32
    %60 = tpu.dynamic_rotate %59 by %c17_i32_25 dim 1 : vector<4x256xf32>, i32 -> vector<4x256xf32>
    %61 = vector.extract_strided_slice %1 {offsets = [0, 0], sizes = [1, 256], strides = [1, 1]} : vector<9x256xf32> to vector<1x256xf32>
    %62 = vector.broadcast %61 : vector<1x256xf32> to vector<4x256xf32>
    %63 = arith.mulf %60, %62 : vector<4x256xf32>
    %c0_26 = arith.constant 0 : index
    %c0_27 = arith.constant 0 : index
    %64 = vector.load %arg6[%c0_26, %c0_27] : memref<36x256xf32, #tpu.memory_space<vmem>>, vector<4x256xf32>
    tpu.vector_store %arg6[%c0_26, %c0_27], %63 {strides = array<i32>} : memref<36x256xf32, #tpu.memory_space<vmem>>, vector<4x256xf32>,
    %c16_i32_28 = arith.constant 16 : i32
    %65 = tpu.dynamic_rotate %59 by %c16_i32_28 dim 1 : vector<4x256xf32>, i32 -> vector<4x256xf32>
    %66 = vector.extract_strided_slice %1 {offsets = [1, 0], sizes = [1, 256], strides = [1, 1]} : vector<9x256xf32> to vector<1x256xf32>
    %67 = vector.broadcast %66 : vector<1x256xf32> to vector<4x256xf32>
    %68 = arith.mulf %65, %67 : vector<4x256xf32>
    %c4_29 = arith.constant 4 : index
    %c0_30 = arith.constant 0 : index
    %69 = vector.load %arg6[%c4_29, %c0_30] : memref<36x256xf32, #tpu.memory_space<vmem>>, vector<4x256xf32>
    tpu.vector_store %arg6[%c4_29, %c0_30], %68 {strides = array<i32>} : memref<36x256xf32, #tpu.memory_space<vmem>>, vector<4x256xf32>,
    %c15_i32_31 = arith.constant 15 : i32
    %70 = tpu.dynamic_rotate %59 by %c15_i32_31 dim 1 : vector<4x256xf32>, i32 -> vector<4x256xf32>
    %71 = vector.extract_strided_slice %1 {offsets = [2, 0], sizes = [1, 256], strides = [1, 1]} : vector<9x256xf32> to vector<1x256xf32>
    %72 = vector.broadcast %71 : vector<1x256xf32> to vector<4x256xf32>
    %73 = arith.mulf %70, %72 : vector<4x256xf32>
    %c8_32 = arith.constant 8 : index
    %c0_33 = arith.constant 0 : index
    %74 = vector.load %arg6[%c8_32, %c0_33] : memref<36x256xf32, #tpu.memory_space<vmem>>, vector<4x256xf32>
    tpu.vector_store %arg6[%c8_32, %c0_33], %73 {strides = array<i32>} : memref<36x256xf32, #tpu.memory_space<vmem>>, vector<4x256xf32>,
    %c1_i32_34 = arith.constant 1 : i32
    %75 = tpu.dynamic_rotate %59 by %c1_i32_34 dim 1 : vector<4x256xf32>, i32 -> vector<4x256xf32>
    %76 = vector.extract_strided_slice %1 {offsets = [3, 0], sizes = [1, 256], strides = [1, 1]} : vector<9x256xf32> to vector<1x256xf32>
    %77 = vector.broadcast %76 : vector<1x256xf32> to vector<4x256xf32>
    %78 = arith.mulf %75, %77 : vector<4x256xf32>
    %c12_35 = arith.constant 12 : index
    %c0_36 = arith.constant 0 : index
    %79 = vector.load %arg6[%c12_35, %c0_36] : memref<36x256xf32, #tpu.memory_space<vmem>>, vector<4x256xf32>
    tpu.vector_store %arg6[%c12_35, %c0_36], %78 {strides = array<i32>} : memref<36x256xf32, #tpu.memory_space<vmem>>, vector<4x256xf32>,
    %80 = vector.extract_strided_slice %1 {offsets = [4, 0], sizes = [1, 256], strides = [1, 1]} : vector<9x256xf32> to vector<1x256xf32>
    %81 = vector.broadcast %80 : vector<1x256xf32> to vector<4x256xf32>
    %82 = arith.mulf %59, %81 : vector<4x256xf32>
    %c16_37 = arith.constant 16 : index
    %c0_38 = arith.constant 0 : index
    %83 = vector.load %arg6[%c16_37, %c0_38] : memref<36x256xf32, #tpu.memory_space<vmem>>, vector<4x256xf32>
    tpu.vector_store %arg6[%c16_37, %c0_38], %82 {strides = array<i32>} : memref<36x256xf32, #tpu.memory_space<vmem>>, vector<4x256xf32>,
    %c255_i32_39 = arith.constant 255 : i32
    %84 = tpu.dynamic_rotate %59 by %c255_i32_39 dim 1 : vector<4x256xf32>, i32 -> vector<4x256xf32>
    %85 = vector.extract_strided_slice %1 {offsets = [5, 0], sizes = [1, 256], strides = [1, 1]} : vector<9x256xf32> to vector<1x256xf32>
    %86 = vector.broadcast %85 : vector<1x256xf32> to vector<4x256xf32>
    %87 = arith.mulf %84, %86 : vector<4x256xf32>
    %c20_40 = arith.constant 20 : index
    %c0_41 = arith.constant 0 : index
    %88 = vector.load %arg6[%c20_40, %c0_41] : memref<36x256xf32, #tpu.memory_space<vmem>>, vector<4x256xf32>
    tpu.vector_store %arg6[%c20_40, %c0_41], %87 {strides = array<i32>} : memref<36x256xf32, #tpu.memory_space<vmem>>, vector<4x256xf32>,
    %c241_i32_42 = arith.constant 241 : i32
    %89 = tpu.dynamic_rotate %59 by %c241_i32_42 dim 1 : vector<4x256xf32>, i32 -> vector<4x256xf32>
    %90 = vector.extract_strided_slice %1 {offsets = [6, 0], sizes = [1, 256], strides = [1, 1]} : vector<9x256xf32> to vector<1x256xf32>
    %91 = vector.broadcast %90 : vector<1x256xf32> to vector<4x256xf32>
    %92 = arith.mulf %89, %91 : vector<4x256xf32>
    %c24_43 = arith.constant 24 : index
    %c0_44 = arith.constant 0 : index
    %93 = vector.load %arg6[%c24_43, %c0_44] : memref<36x256xf32, #tpu.memory_space<vmem>>, vector<4x256xf32>
    tpu.vector_store %arg6[%c24_43, %c0_44], %92 {strides = array<i32>} : memref<36x256xf32, #tpu.memory_space<vmem>>, vector<4x256xf32>,
    %c240_i32_45 = arith.constant 240 : i32
    %94 = tpu.dynamic_rotate %59 by %c240_i32_45 dim 1 : vector<4x256xf32>, i32 -> vector<4x256xf32>
    %95 = vector.extract_strided_slice %1 {offsets = [7, 0], sizes = [1, 256], strides = [1, 1]} : vector<9x256xf32> to vector<1x256xf32>
    %96 = vector.broadcast %95 : vector<1x256xf32> to vector<4x256xf32>
    %97 = arith.mulf %94, %96 : vector<4x256xf32>
    %c28_46 = arith.constant 28 : index
    %c0_47 = arith.constant 0 : index
    %98 = vector.load %arg6[%c28_46, %c0_47] : memref<36x256xf32, #tpu.memory_space<vmem>>, vector<4x256xf32>
    tpu.vector_store %arg6[%c28_46, %c0_47], %97 {strides = array<i32>} : memref<36x256xf32, #tpu.memory_space<vmem>>, vector<4x256xf32>,
    %c239_i32_48 = arith.constant 239 : i32
    %99 = tpu.dynamic_rotate %59 by %c239_i32_48 dim 1 : vector<4x256xf32>, i32 -> vector<4x256xf32>
    %100 = vector.extract_strided_slice %1 {offsets = [8, 0], sizes = [1, 256], strides = [1, 1]} : vector<9x256xf32> to vector<1x256xf32>
    %101 = vector.broadcast %100 : vector<1x256xf32> to vector<4x256xf32>
    %102 = arith.mulf %99, %101 : vector<4x256xf32>
    %c32_49 = arith.constant 32 : index
    %c0_50 = arith.constant 0 : index
    %103 = vector.load %arg6[%c32_49, %c0_50] : memref<36x256xf32, #tpu.memory_space<vmem>>, vector<4x256xf32>
    tpu.vector_store %arg6[%c32_49, %c0_50], %102 {strides = array<i32>} : memref<36x256xf32, #tpu.memory_space<vmem>>, vector<4x256xf32>,
    %c0_51 = arith.constant 0 : index
    %c0_52 = arith.constant 0 : index
    %104 = vector.load %arg6[%c0_51, %c0_52] : memref<36x256xf32, #tpu.memory_space<vmem>>, vector<36x256xf32>
    %cst_53 = arith.constant dense<0.000000e+00> : vector<8x256xf32>
    %105 = tpu.matmul %0, %104, %cst_53 {dimension_numbers = #tpu.dot_dimension_numbers<[1], [0], [0], [1], [0, 0, 1, 1], [], []>} : vector<8x36xf32>, vector<36x256xf32>, vector<8x256xf32> -> vector<8x256xf32>
    %c8_54 = arith.constant 8 : index
    %c0_55 = arith.constant 0 : index
    %106 = vector.load %arg5[%c8_54, %c0_55] : memref<16x256xf32, #tpu.memory_space<vmem>>, vector<8x256xf32>
    tpu.vector_store %arg5[%c8_54, %c0_55], %105 {strides = array<i32>} : memref<16x256xf32, #tpu.memory_space<vmem>>, vector<8x256xf32>,
    %cst_56 = arith.constant dense<0.000000e+00> : vector<8xf32>
    %107 = vector.multi_reduction <add>, %105, %cst_56 [1] : vector<8x256xf32> to vector<8xf32>
    %108 = vector.shape_cast %107 : vector<8xf32> to vector<8x1xf32>
    %109 = arith.addf %54, %108 : vector<8x1xf32>
    %110 = arith.mulf %105, %105 : vector<8x256xf32>
    %cst_57 = arith.constant dense<0.000000e+00> : vector<8xf32>
    %111 = vector.multi_reduction <add>, %110, %cst_57 [1] : vector<8x256xf32> to vector<8xf32>
    %112 = vector.shape_cast %111 : vector<8xf32> to vector<8x1xf32>
    %113 = arith.addf %58, %112 : vector<8x1xf32>
    %cst_58 = arith.constant 0.001953125 : f32
    %114 = vector.broadcast %cst_58 : f32 to vector<8x1xf32>
    %115 = arith.mulf %109, %114 : vector<8x1xf32>
    %cst_59 = arith.constant 0.001953125 : f32
    %116 = vector.broadcast %cst_59 : f32 to vector<8x1xf32>
    %117 = arith.mulf %113, %116 : vector<8x1xf32>
    %118 = arith.mulf %115, %115 : vector<8x1xf32>
    %119 = arith.subf %117, %118 : vector<8x1xf32>
    %c0_60 = arith.constant 0 : index
    %c0_61 = arith.constant 0 : index
    %120 = vector.load %arg3[%c0_60, %c0_61] : memref<8x1xf32, #tpu.memory_space<vmem>>, vector<8x1xf32>
    %cst_62 = arith.constant 9.99999974E-6 : f32
    %121 = vector.broadcast %cst_62 : f32 to vector<8x1xf32>
    %122 = arith.addf %119, %121 : vector<8x1xf32>
    %123 = math.rsqrt %122 : vector<8x1xf32>
    %124 = arith.mulf %120, %123 : vector<8x1xf32>
    %c0_63 = arith.constant 0 : index
    %c0_64 = arith.constant 0 : index
    %125 = vector.load %arg4[%c0_63, %c0_64] : memref<8x1xf32, #tpu.memory_space<vmem>>, vector<8x1xf32>
    %126 = arith.mulf %115, %124 : vector<8x1xf32>
    %127 = arith.subf %125, %126 : vector<8x1xf32>
    %c0_65 = arith.constant 0 : index
    %c0_66 = arith.constant 0 : index
    %128 = vector.load %arg5[%c0_65, %c0_66] : memref<16x256xf32, #tpu.memory_space<vmem>>, vector<8x256xf32>
    %129 = vector.broadcast %124 : vector<8x1xf32> to vector<8x256xf32>
    %130 = arith.mulf %128, %129 : vector<8x256xf32>
    %131 = vector.broadcast %127 : vector<8x1xf32> to vector<8x256xf32>
    %132 = arith.addf %130, %131 : vector<8x256xf32>
    %cst_67 = arith.constant 0.000000e+00 : f32
    %133 = vector.broadcast %cst_67 : f32 to vector<8x256xf32>
    %134 = arith.maximumf %132, %133 : vector<8x256xf32>
    %c0_68 = arith.constant 0 : index
    %c0_69 = arith.constant 0 : index
    %135 = vector.load %arg5[%c0_68, %c0_69] : memref<16x256xf32, #tpu.memory_space<vmem>>, vector<8x256xf32>
    tpu.vector_store %arg5[%c0_68, %c0_69], %134 {strides = array<i32>} : memref<16x256xf32, #tpu.memory_space<vmem>>, vector<8x256xf32>,
    %c8_70 = arith.constant 8 : index
    %c0_71 = arith.constant 0 : index
    %136 = vector.load %arg5[%c8_70, %c0_71] : memref<16x256xf32, #tpu.memory_space<vmem>>, vector<8x256xf32>
    %137 = vector.broadcast %124 : vector<8x1xf32> to vector<8x256xf32>
    %138 = arith.mulf %136, %137 : vector<8x256xf32>
    %139 = vector.broadcast %127 : vector<8x1xf32> to vector<8x256xf32>
    %140 = arith.addf %138, %139 : vector<8x256xf32>
    %cst_72 = arith.constant 0.000000e+00 : f32
    %141 = vector.broadcast %cst_72 : f32 to vector<8x256xf32>
    %142 = arith.maximumf %140, %141 : vector<8x256xf32>
    %c8_73 = arith.constant 8 : index
    %c0_74 = arith.constant 0 : index
    %143 = vector.load %arg5[%c8_73, %c0_74] : memref<16x256xf32, #tpu.memory_space<vmem>>, vector<8x256xf32>
    tpu.vector_store %arg5[%c8_73, %c0_74], %142 {strides = array<i32>} : memref<16x256xf32, #tpu.memory_space<vmem>>, vector<8x256xf32>,
    return
  }
}

</mosaic_0001>

<llo_original>
// kernel: tpu_custom_call.1
$region0: #{tpu_custom_call.1}
  #allocation0 [shape = 'u32[]', space=smem, size = 0x4, offset = 0x4, fixed_abs, tag = 'smem constant byte address 0x4 - core index']
  #allocation1 [shape = 'u32[144,128]{1,0:T(1,128)}', space=vmem, size = 0x12000, scoped, tag = 'internal scratch']
  #allocation2 [shape = 'f32[36,256]{1,0:T(8,128)}', space=vmem, size = 0xa000, scoped, tag = 'scratch operand']
  %s0 = inlined_call_operand.vmem [shape: f32[8,256], index: 0, kind: input, shape index: {}]
  %s1 = inlined_call_operand.hbm [shape: f32[8,36], index: 1, kind: input, shape index: {}]
  %s2 = inlined_call_operand.hbm [shape: f32[9,256], index: 2, kind: input, shape index: {}]
  %s3 = inlined_call_operand.vmem [shape: f32[8,1], index: 3, kind: input, shape index: {}]
  %s4 = inlined_call_operand.vmem [shape: f32[8,1], index: 4, kind: input, shape index: {}]
  %s5 = inlined_call_operand.hbm [shape: f32[16,256], index: 5, kind: output, shape index: {}]
  %s6 = sld [smem:[#allocation0]]
  $region38: #{tpu_custom_call.1} parent=0
    _
  %s8 = ssub.s32 1, %s6
  %s9 = scalar_select 0, %s8, %s6
  $region1: #{tpu_custom_call.1} parent=0
    #allocation3 [shape = 'u8[4096]{0}', space=vmem, size = 0x1000, scoped, tag = 'input window, operand 1, single buffered']
    #allocation4 [shape = 's32[1]{0}', space=sflag, size = 0x4, scoped, tag = 'scoped memory for tpu_custom_call.1']
    #allocation5 [shape = 's32[1]{0}', space=sflag, size = 0x4, scoped, tag = 'scoped memory for tpu_custom_call.1']
    #allocation6 [shape = 'u8[16384]{0}', space=vmem, size = 0x4000, scoped, tag = 'input window, operand 2, single buffered']
    #allocation7 [shape = 's32[1]{0}', space=sflag, size = 0x4, scoped, tag = 'scoped memory for tpu_custom_call.1']
    #allocation8 [shape = 'u8[16384]{0}', space=vmem, size = 0x4000, scoped, tag = 'output window, operand 0, single buffered']
    %10 = vsyncpa [#allocation4], 0
    %11 = vsyncpa [#allocation7], 0
    %12 = vsyncpa [#allocation5], 0
    // Predicated region
    $region2: #{tpu_custom_call.1} parent=1 // pred_check
      _
    $region3: #{tpu_custom_call.1} parent=1 // pred_check_branch
      %14 = sbr.rel (0) target = $region5
    $region4: #{tpu_custom_call.1} parent=1 // pred_region
      _
    $region5: #{tpu_custom_call.1} parent=1 // pred_fallthru
      _
    // Predicated region
    $region6: #{tpu_custom_call.1} parent=1 // pred_check
      _
    $region7: #{tpu_custom_call.1} parent=1 // pred_check_branch
      %16 = sbr.rel (0) target = $region9
    $region8: #{tpu_custom_call.1} parent=1 // pred_region
      %s18 = ssub.s32 128, 128
      %19 = vsyncadd [#allocation4], %s18
      %s21 = sshll.u32 [#allocation3], 4
      %s22 = int_to_ptr.vmem [resolvable:$true] %s21
      %24 = dma.hbm_to_vmem [thread:$0]  %s1, 128, %s22, [#allocation4]
    $region9: #{tpu_custom_call.1} parent=1 // pred_fallthru
      _
    // Predicated region
    $region10: #{tpu_custom_call.1} parent=1 // pred_check
      _
    $region11: #{tpu_custom_call.1} parent=1 // pred_check_branch
      %26 = sbr.rel (0) target = $region13
    $region12: #{tpu_custom_call.1} parent=1 // pred_region
      %s28 = ssub.s32 512, 512
      %29 = vsyncadd [#allocation7], %s28
      %s30 = sshll.u32 [#allocation6], 4
      %s31 = int_to_ptr.vmem [resolvable:$true] %s30
      %36 = dma.hbm_to_vmem [thread:$0]  %s2, 512, %s31, [#allocation7], 256, 256, 16
    $region13: #{tpu_custom_call.1} parent=1 // pred_fallthru
      _
    // Predicated region
    $region14: #{tpu_custom_call.1} parent=1 // pred_check
      _
    $region15: #{tpu_custom_call.1} parent=1 // pred_check_branch
      %38 = sbr.rel (0) target = $region17
    $region16: #{tpu_custom_call.1} parent=1 // pred_region
      _
    $region17: #{tpu_custom_call.1} parent=1 // pred_fallthru
      _
    // Predicated region
    $region18: #{tpu_custom_call.1} parent=1 // pred_check
      _
    $region19: #{tpu_custom_call.1} parent=1 // pred_check_branch
      %40 = sbr.rel (0) target = $region21
    $region20: #{tpu_custom_call.1} parent=1 // pred_region
      _
    $region21: #{tpu_custom_call.1} parent=1 // pred_fallthru
      _
    // Predicated region
    $region22: #{tpu_custom_call.1} parent=1 // pred_check
      _
    $region23: #{tpu_custom_call.1} parent=1 // pred_check_branch
      %42 = sbr.rel (0) target = $region25
    $region24: #{tpu_custom_call.1} parent=1 // pred_region
      %43 = dma.done [#allocation4], 128
    $region25: #{tpu_custom_call.1} parent=1 // pred_fallthru
      _
    // Predicated region
    $region26: #{tpu_custom_call.1} parent=1 // pred_check
      _
    $region27: #{tpu_custom_call.1} parent=1 // pred_check_branch
      %45 = sbr.rel (0) target = $region29
    $region28: #{tpu_custom_call.1} parent=1 // pred_region
      %46 = dma.done [#allocation7], 512
    $region29: #{tpu_custom_call.1} parent=1 // pred_fallthru
      _
    %v47 = vld [vmem:[#allocation3] sm:$0xff]
    %v48 = vld [vmem:[#allocation6] sm:$0xff]
    %v49 = vld [vmem:[#allocation6 + $0x8] sm:$0xff]
    %v50 = vld [vmem:[#allocation6 + $0x10] sm:$0x1]
    %v51 = vld [vmem:[#allocation6 + $0x18] sm:$0x1]
    %v52 = vld [vmem:[%s0] sm:$0xf]
    %v53 = vld [vmem:[%s0 + $0x8] sm:$0xf]
    %54 = vrot.lane.b32.xlu0 %v52, 17
    %v55 = vpop.permute.xlu0 %54
    %56 = vrot.lane.b32.xlu0 %v53, 17
    %v57 = vpop.permute.xlu0 %56
    %v58 = vlaneseq
    %v59 = vand.u32 %v58, 127
    %vm60 = vcmp.lt.s32.totalorder %v59, 17
    %v61 = vsel %vm60, %v55, %v57
    %v62 = vsel %vm60, %v57, %v55
    %v63 = vlaneseq
    %v64 = vshrl.u32 %v63, 7
    %v65 = vsub.s32 0, %v64
    %v66 = vrot.slane %v48, %v65
    %v67 = vlaneseq
    %v68 = vshrl.u32 %v67, 7
    %v69 = vsub.s32 0, %v68
    %v70 = vrot.slane %v49, %v69
    %v71 = vmul.f32 %v62, %v66
    %v72 = vmul.f32 %v61, %v70
    %73 = vst [vmem:[#allocation2] sm:$0xf] %v71
    %74 = vst [vmem:[#allocation2 + $0x8] sm:$0xf] %v72
    %75 = vrot.lane.b32.xlu0 %v52, 16
    %v76 = vpop.permute.xlu0 %75
    %77 = vrot.lane.b32.xlu0 %v53, 16
    %v78 = vpop.permute.xlu0 %77
    %vm79 = vcmp.lt.s32.totalorder %v59, 16
    %v80 = vsel %vm79, %v76, %v78
    %v81 = vsel %vm79, %v78, %v76
    %v82 = vlaneseq
    %v83 = vshrl.u32 %v82, 7
    %v84 = vsub.s32 1, %v83
    %v85 = vrot.slane %v48, %v84
    %v86 = vlaneseq
    %v87 = vshrl.u32 %v86, 7
    %v88 = vsub.s32 1, %v87
    %v89 = vrot.slane %v49, %v88
    %v90 = vmul.f32 %v81, %v85
    %v91 = vmul.f32 %v80, %v89
    %v94 = vrot.slane %v90, 4
    %v95 = vrot.slane %v91, 4
    %98 = vst [vmem:[#allocation2] sm:$0xf0] %v94
    %99 = vst [vmem:[#allocation2 + $0x8] sm:$0xf0] %v95
    %100 = vrot.lane.b32.xlu0 %v52, 15
    %v101 = vpop.permute.xlu0 %100
    %102 = vrot.lane.b32.xlu0 %v53, 15
    %v103 = vpop.permute.xlu0 %102
    %vm104 = vcmp.lt.s32.totalorder %v59, 15
    %v105 = vsel %vm104, %v101, %v103
    %v106 = vsel %vm104, %v103, %v101
    %v107 = vlaneseq
    %v108 = vshrl.u32 %v107, 7
    %v109 = vsub.s32 2, %v108
    %v110 = vrot.slane %v48, %v109
    %v111 = vlaneseq
    %v112 = vshrl.u32 %v111, 7
    %v113 = vsub.s32 2, %v112
    %v114 = vrot.slane %v49, %v113
    %v115 = vmul.f32 %v106, %v110
    %v116 = vmul.f32 %v105, %v114
    %117 = vst [vmem:[#allocation2 + $0x10] sm:$0xf] %v115
    %118 = vst [vmem:[#allocation2 + $0x18] sm:$0xf] %v116
    %119 = vrot.lane.b32.xlu0 %v52, 1
    %v120 = vpop.permute.xlu0 %119
    %121 = vrot.lane.b32.xlu0 %v53, 1
    %v122 = vpop.permute.xlu0 %121
    %vm123 = vcmp.lt.s32.totalorder %v59, 1
    %v124 = vsel %vm123, %v120, %v122
    %v125 = vsel %vm123, %v122, %v120
    %v126 = vlaneseq
    %v127 = vshrl.u32 %v126, 7
    %v128 = vsub.s32 3, %v127
    %v129 = vrot.slane %v48, %v128
    %v130 = vlaneseq
    %v131 = vshrl.u32 %v130, 7
    %v132 = vsub.s32 3, %v131
    %v133 = vrot.slane %v49, %v132
    %v134 = vmul.f32 %v125, %v129
    %v135 = vmul.f32 %v124, %v133
    %v138 = vrot.slane %v134, 4
    %v139 = vrot.slane %v135, 4
    %142 = vst [vmem:[#allocation2 + $0x10] sm:$0xf0] %v138
    %143 = vst [vmem:[#allocation2 + $0x18] sm:$0xf0] %v139
    %v144 = vlaneseq
    %v145 = vshrl.u32 %v144, 7
    %v146 = vsub.s32 4, %v145
    %v147 = vrot.slane %v48, %v146
    %v148 = vlaneseq
    %v149 = vshrl.u32 %v148, 7
    %v150 = vsub.s32 4, %v149
    %v151 = vrot.slane %v49, %v150
    %v152 = vmul.f32 %v52, %v147
    %v153 = vmul.f32 %v53, %v151
    %154 = vst [vmem:[#allocation2 + $0x20] sm:$0xf] %v152
    %155 = vst [vmem:[#allocation2 + $0x28] sm:$0xf] %v153
    %156 = vrot.lane.b32.xlu0 %v52, 127
    %v157 = vpop.permute.xlu0 %156
    %158 = vrot.lane.b32.xlu0 %v53, 127
    %v159 = vpop.permute.xlu0 %158
    %vm160 = vcmp.lt.s32.totalorder %v59, 127
    %v161 = vsel %vm160, %v157, %v159
    %v162 = vsel %vm160, %v159, %v157
    %v163 = vlaneseq
    %v164 = vshrl.u32 %v163, 7
    %v165 = vsub.s32 5, %v164
    %v166 = vrot.slane %v48, %v165
    %v167 = vlaneseq
    %v168 = vshrl.u32 %v167, 7
    %v169 = vsub.s32 5, %v168
    %v170 = vrot.slane %v49, %v169
    %v171 = vmul.f32 %v161, %v166
    %v172 = vmul.f32 %v162, %v170
    %v175 = vrot.slane %v171, 4
    %v176 = vrot.slane %v172, 4
    %179 = vst [vmem:[#allocation2 + $0x20] sm:$0xf0] %v175
    %180 = vst [vmem:[#allocation2 + $0x28] sm:$0xf0] %v176
    %181 = vrot.lane.b32.xlu0 %v52, 113
    %v182 = vpop.permute.xlu0 %181
    %183 = vrot.lane.b32.xlu0 %v53, 113
    %v184 = vpop.permute.xlu0 %183
    %vm185 = vcmp.lt.s32.totalorder %v59, 113
    %v186 = vsel %vm185, %v182, %v184
    %v187 = vsel %vm185, %v184, %v182
    %v188 = vlaneseq
    %v189 = vshrl.u32 %v188, 7
    %v190 = vsub.s32 6, %v189
    %v191 = vrot.slane %v48, %v190
    %v192 = vlaneseq
    %v193 = vshrl.u32 %v192, 7
    %v194 = vsub.s32 6, %v193
    %v195 = vrot.slane %v49, %v194
    %v196 = vmul.f32 %v186, %v191
    %v197 = vmul.f32 %v187, %v195
    %198 = vst [vmem:[#allocation2 + $0x30] sm:$0xf] %v196
    %199 = vst [vmem:[#allocation2 + $0x38] sm:$0xf] %v197
    %200 = vrot.lane.b32.xlu0 %v52, 112
    %v201 = vpop.permute.xlu0 %200
    %202 = vrot.lane.b32.xlu0 %v53, 112
    %v203 = vpop.permute.xlu0 %202
    %vm204 = vcmp.lt.s32.totalorder %v59, 112
    %v205 = vsel %vm204, %v201, %v203
    %v206 = vsel %vm204, %v203, %v201
    %v207 = vlaneseq
    %v208 = vshrl.u32 %v207, 7
    %v209 = vsub.s32 7, %v208
    %v210 = vrot.slane %v48, %v209
    %v211 = vlaneseq
    %v212 = vshrl.u32 %v211, 7
    %v213 = vsub.s32 7, %v212
    %v214 = vrot.slane %v49, %v213
    %v215 = vmul.f32 %v205, %v210
    %v216 = vmul.f32 %v206, %v214
    %v219 = vrot.slane %v215, 4
    %v220 = vrot.slane %v216, 4
    %223 = vst [vmem:[#allocation2 + $0x30] sm:$0xf0] %v219
    %224 = vst [vmem:[#allocation2 + $0x38] sm:$0xf0] %v220
    %225 = vrot.lane.b32.xlu0 %v52, 111
    %v226 = vpop.permute.xlu0 %225
    %227 = vrot.lane.b32.xlu0 %v53, 111
    %v228 = vpop.permute.xlu0 %227
    %vm229 = vcmp.lt.s32.totalorder %v59, 111
    %v230 = vsel %vm229, %v226, %v228
    %v231 = vsel %vm229, %v228, %v226
    %v232 = vlaneseq
    %v233 = vshrl.u32 %v232, 7
    %v234 = vsub.s32 0, %v233
    %v235 = vrot.slane %v50, %v234
    %v236 = vlaneseq
    %v237 = vshrl.u32 %v236, 7
    %v238 = vsub.s32 0, %v237
    %v239 = vrot.slane %v51, %v238
    %v240 = vmul.f32 %v230, %v235
    %v241 = vmul.f32 %v231, %v239
    %242 = vst [vmem:[#allocation2 + $0x40] sm:$0xf] %v240
    %243 = vst [vmem:[#allocation2 + $0x48] sm:$0xf] %v241
    %v244 = vld [vmem:[#allocation2] sm:$0xff]
    %v245 = vld [vmem:[#allocation2 + $0x8] sm:$0xff]
    %v246 = vld [vmem:[#allocation2 + $0x10] sm:$0xff]
    %v247 = vld [vmem:[#allocation2 + $0x18] sm:$0xff]
    %v248 = vld [vmem:[#allocation2 + $0x20] sm:$0xff]
    %v249 = vld [vmem:[#allocation2 + $0x28] sm:$0xff]
    %v250 = vld [vmem:[#allocation2 + $0x30] sm:$0xff]
    %v251 = vld [vmem:[#allocation2 + $0x38] sm:$0xff]
    %v252 = vld [vmem:[#allocation2 + $0x40] sm:$0xf]
    %v253 = vld [vmem:[#allocation2 + $0x48] sm:$0xf]
    %vm254 = vcmask 293888
    %v256 = vsel %vm254, %v47, 0
    %vm258 = vcmask 1043456
    %v260 = vsel %vm258, %v252, 0
    %v263 = vsel %vm258, %v253, 0
    %265 = vmatprep.subr.mxu0 %v245
    %266 = vmatpush1.msra.mxu0 %v244
    %267 = vmatprep.subr.mxu0 %v247
    %268 = vmatpush1.msra.mxu0 %v246
    %269 = vmatprep.subr.mxu0 %v249
    %270 = vmatpush1.msra.mxu0 %v248
    %271 = vmatprep.subr.mxu0 %v251
    %272 = vmatpush1.msra.mxu0 %v250
    %273 = vmatprep.subr.mxu0 %v263
    %274 = vmatpush1.msra.mxu0 %v260
    %275 = vmatprep.subr.mxu0 0.0
    %276 = vmatpush1.msra.mxu0 0.0
    %277 = vmatprep.subr.mxu0 0.0
    %278 = vmatpush1.msra.mxu0 0.0
    %279 = vmatprep.subr.mxu0 0.0
    %280 = vmatpush1.msra.mxu0 0.0
    %281 = vmatprep.subr.mxu0 0.0
    %282 = vmatpush1.msra.mxu0 0.0
    %283 = vmatprep.subr.mxu0 0.0
    %284 = vmatpush1.msra.mxu0 0.0
    %285 = vmatprep.subr.mxu0 0.0
    %286 = vmatpush1.msra.mxu0 0.0
    %287 = vmatprep.subr.mxu0 0.0
    %288 = vmatpush1.msra.mxu0 0.0
    %289 = vmatprep.subr.mxu0 0.0
    %290 = vmatpush1.msra.mxu0 0.0
    %291 = vmatprep.subr.mxu0 0.0
    %292 = vmatpush1.msra.mxu0 0.0
    %293 = vmatprep.subr.mxu0 0.0
    %294 = vmatpush1.msra.mxu0 0.0
    %295 = vmatprep.subr.mxu0 0.0
    %296 = vmatpush1.msra.mxu0 0.0
    %297 = vmatprep.subr.mxu0 0.0
    %298 = vmatpush1.msra.mxu0 0.0
    %299 = vmatprep.subr.mxu0 0.0
    %300 = vmatpush1.msra.mxu0 0.0
    %301 = vmatprep.subr.mxu0 0.0
    %302 = vmatpush1.msra.mxu0 0.0
    %303 = vmatprep.subr.mxu0 0.0
    %304 = vmatpush1.msra.mxu0 0.0
    %305 = vmatprep.subr.mxu0 0.0
    %306 = vmatpush1.msra.mxu0 0.0
    %307 = vmatprep.subr.mxu0 0.0
    %308 = vmatpush1.msra.mxu0 0.0
    %309 = vmatprep.subr.mxu0 0.0
    %310 = vmatpush1.msra.mxu0 0.0
    %311 = vmatprep.subr.mxu0 0.0
    %312 = vmatpush1.msra.mxu0 0.0
    %313 = vmatprep.subr.mxu0 0.0
    %314 = vmatpush1.msra.mxu0 0.0
    %315 = vmatprep.subr.mxu0 0.0
    %316 = vmatpush1.msra.mxu0 0.0
    %317 = vmatprep.subr.mxu0 0.0
    %318 = vmatpush1.msra.mxu0 0.0
    %319 = vmatprep.subr.mxu0 0.0
    %320 = vmatpush1.msra.mxu0 0.0
    %321 = vmatprep.subr.mxu0 0.0
    %322 = vmatpush1.msra.mxu0 0.0
    %323 = vmatprep.subr.mxu0 0.0
    %324 = vmatpush1.msra.mxu0 0.0
    %325 = vmatprep.subr.mxu0 0.0
    %326 = vmatpush1.msra.mxu0 0.0
    %327 = vmatprep.subr.mxu0 0.0
    %328 = vmatpush1.msra.mxu0 0.0
    %329 = vmatprep.mubr.f32.mxu0 0.0
    %330 = vmatmul.mubr.f32.gmra.mrb[0].mxu0 %v256
    %v331 = vpop.f32.mrb[0].mxu0
    %v332 = vadd.f32 0.0, %v331
    %v333 = vpop.f32.mrb[0].mxu0
    %v334 = vadd.f32 0.0, %v333
    %335 = vdwg.mxu0
    %336 = vst [vmem:[#allocation8] sm:$0xff] %v332
    %337 = vst [vmem:[#allocation8 + $0x8] sm:$0xff] %v334
    %v338 = vadd.f32 %v332, %v334
    %339 = vadd.xlane.f32.xlu0 %v338
    %v340 = vpop.xlane.xlu0 %339
    %v341 = vadd.f32 %v340, 0.0
    %v342 = vmul.f32 %v332, %v332
    %v343 = vmul.f32 %v334, %v334
    %v344 = vadd.f32 %v342, %v343
    %345 = vadd.xlane.f32.xlu0 %v344
    %v346 = vpop.xlane.xlu0 %345
    %v347 = vadd.f32 %v346, 0.0
    %v348 = vld [vmem:[%s0] sm:$0xf0]
    %v349 = vld [vmem:[%s0 + $0x8] sm:$0xf0]
    %v352 = vrot.slane %v348, 4
    %v353 = vrot.slane %v349, 4
    %356 = vrot.lane.b32.xlu0 %v352, 17
    %v357 = vpop.permute.xlu0 %356
    %358 = vrot.lane.b32.xlu0 %v353, 17
    %v359 = vpop.permute.xlu0 %358
    %v360 = vsel %vm60, %v357, %v359
    %v361 = vsel %vm60, %v359, %v357
    %v362 = vmul.f32 %v361, %v66
    %v363 = vmul.f32 %v360, %v70
    %364 = vst [vmem:[#allocation2] sm:$0xf] %v362
    %365 = vst [vmem:[#allocation2 + $0x8] sm:$0xf] %v363
    %366 = vrot.lane.b32.xlu0 %v352, 16
    %v367 = vpop.permute.xlu0 %366
    %368 = vrot.lane.b32.xlu0 %v353, 16
    %v369 = vpop.permute.xlu0 %368
    %v370 = vsel %vm79, %v367, %v369
    %v371 = vsel %vm79, %v369, %v367
    %v372 = vmul.f32 %v371, %v85
    %v373 = vmul.f32 %v370, %v89
    %v376 = vrot.slane %v372, 4
    %v377 = vrot.slane %v373, 4
    %380 = vst [vmem:[#allocation2] sm:$0xf0] %v376
    %381 = vst [vmem:[#allocation2 + $0x8] sm:$0xf0] %v377
    %382 = vrot.lane.b32.xlu0 %v352, 15
    %v383 = vpop.permute.xlu0 %382
    %384 = vrot.lane.b32.xlu0 %v353, 15
    %v385 = vpop.permute.xlu0 %384
    %v386 = vsel %vm104, %v383, %v385
    %v387 = vsel %vm104, %v385, %v383
    %v388 = vmul.f32 %v387, %v110
    %v389 = vmul.f32 %v386, %v114
    %390 = vst [vmem:[#allocation2 + $0x10] sm:$0xf] %v388
    %391 = vst [vmem:[#allocation2 + $0x18] sm:$0xf] %v389
    %392 = vrot.lane.b32.xlu0 %v352, 1
    %v393 = vpop.permute.xlu0 %392
    %394 = vrot.lane.b32.xlu0 %v353, 1
    %v395 = vpop.permute.xlu0 %394
    %v396 = vsel %vm123, %v393, %v395
    %v397 = vsel %vm123, %v395, %v393
    %v398 = vmul.f32 %v397, %v129
    %v399 = vmul.f32 %v396, %v133
    %v402 = vrot.slane %v398, 4
    %v403 = vrot.slane %v399, 4
    %406 = vst [vmem:[#allocation2 + $0x10] sm:$0xf0] %v402
    %407 = vst [vmem:[#allocation2 + $0x18] sm:$0xf0] %v403
    %v408 = vmul.f32 %v348, %v147
    %v409 = vmul.f32 %v349, %v151
    %v412 = vrot.slane %v408, 4
    %v413 = vrot.slane %v409, 4
    %416 = vst [vmem:[#allocation2 + $0x20] sm:$0xf] %v412
    %417 = vst [vmem:[#allocation2 + $0x28] sm:$0xf] %v413
    %418 = vrot.lane.b32.xlu0 %v352, 127
    %v419 = vpop.permute.xlu0 %418
    %420 = vrot.lane.b32.xlu0 %v353, 127
    %v421 = vpop.permute.xlu0 %420
    %v422 = vsel %vm160, %v419, %v421
    %v423 = vsel %vm160, %v421, %v419
    %v424 = vmul.f32 %v422, %v166
    %v425 = vmul.f32 %v423, %v170
    %v428 = vrot.slane %v424, 4
    %v429 = vrot.slane %v425, 4
    %432 = vst [vmem:[#allocation2 + $0x20] sm:$0xf0] %v428
    %433 = vst [vmem:[#allocation2 + $0x28] sm:$0xf0] %v429
    %434 = vrot.lane.b32.xlu0 %v352, 113
    %v435 = vpop.permute.xlu0 %434
    %436 = vrot.lane.b32.xlu0 %v353, 113
    %v437 = vpop.permute.xlu0 %436
    %v438 = vsel %vm185, %v435, %v437
    %v439 = vsel %vm185, %v437, %v435
    %v440 = vmul.f32 %v438, %v191
    %v441 = vmul.f32 %v439, %v195
    %442 = vst [vmem:[#allocation2 + $0x30] sm:$0xf] %v440
    %443 = vst [vmem:[#allocation2 + $0x38] sm:$0xf] %v441
    %444 = vrot.lane.b32.xlu0 %v352, 112
    %v445 = vpop.permute.xlu0 %444
    %446 = vrot.lane.b32.xlu0 %v353, 112
    %v447 = vpop.permute.xlu0 %446
    %v448 = vsel %vm204, %v445, %v447
    %v449 = vsel %vm204, %v447, %v445
    %v450 = vmul.f32 %v448, %v210
    %v451 = vmul.f32 %v449, %v214
    %v454 = vrot.slane %v450, 4
    %v455 = vrot.slane %v451, 4
    %458 = vst [vmem:[#allocation2 + $0x30] sm:$0xf0] %v454
    %459 = vst [vmem:[#allocation2 + $0x38] sm:$0xf0] %v455
    %460 = vrot.lane.b32.xlu0 %v352, 111
    %v461 = vpop.permute.xlu0 %460
    %462 = vrot.lane.b32.xlu0 %v353, 111
    %v463 = vpop.permute.xlu0 %462
    %v464 = vsel %vm229, %v461, %v463
    %v465 = vsel %vm229, %v463, %v461
    %v466 = vmul.f32 %v464, %v235
    %v467 = vmul.f32 %v465, %v239
    %468 = vst [vmem:[#allocation2 + $0x40] sm:$0xf] %v466
    %469 = vst [vmem:[#allocation2 + $0x48] sm:$0xf] %v467
    %v470 = vld [vmem:[#allocation2] sm:$0xff]
    %v471 = vld [vmem:[#allocation2 + $0x8] sm:$0xff]
    %v472 = vld [vmem:[#allocation2 + $0x10] sm:$0xff]
    %v473 = vld [vmem:[#allocation2 + $0x18] sm:$0xff]
    %v474 = vld [vmem:[#allocation2 + $0x20] sm:$0xff]
    %v475 = vld [vmem:[#allocation2 + $0x28] sm:$0xff]
    %v476 = vld [vmem:[#allocation2 + $0x30] sm:$0xff]
    %v477 = vld [vmem:[#allocation2 + $0x38] sm:$0xff]
    %v478 = vld [vmem:[#allocation2 + $0x40] sm:$0xf]
    %v479 = vld [vmem:[#allocation2 + $0x48] sm:$0xf]
    %v481 = vsel %vm258, %v478, 0
    %v484 = vsel %vm258, %v479, 0
    %486 = vmatprep.subr.mxu0 %v471
    %487 = vmatpush1.msra.mxu0 %v470
    %488 = vmatprep.subr.mxu0 %v473
    %489 = vmatpush1.msra.mxu0 %v472
    %490 = vmatprep.subr.mxu0 %v475
    %491 = vmatpush1.msra.mxu0 %v474
    %492 = vmatprep.subr.mxu0 %v477
    %493 = vmatpush1.msra.mxu0 %v476
    %494 = vmatprep.subr.mxu0 %v484
    %495 = vmatpush1.msra.mxu0 %v481
    %496 = vmatprep.subr.mxu0 0.0
    %497 = vmatpush1.msra.mxu0 0.0
    %498 = vmatprep.subr.mxu0 0.0
    %499 = vmatpush1.msra.mxu0 0.0
    %500 = vmatprep.subr.mxu0 0.0
    %501 = vmatpush1.msra.mxu0 0.0
    %502 = vmatprep.subr.mxu0 0.0
    %503 = vmatpush1.msra.mxu0 0.0
    %504 = vmatprep.subr.mxu0 0.0
    %505 = vmatpush1.msra.mxu0 0.0
    %506 = vmatprep.subr.mxu0 0.0
    %507 = vmatpush1.msra.mxu0 0.0
    %508 = vmatprep.subr.mxu0 0.0
    %509 = vmatpush1.msra.mxu0 0.0
    %510 = vmatprep.subr.mxu0 0.0
    %511 = vmatpush1.msra.mxu0 0.0
    %512 = vmatprep.subr.mxu0 0.0
    %513 = vmatpush1.msra.mxu0 0.0
    %514 = vmatprep.subr.mxu0 0.0
    %515 = vmatpush1.msra.mxu0 0.0
    %516 = vmatprep.subr.mxu0 0.0
    %517 = vmatpush1.msra.mxu0 0.0
    %518 = vmatprep.subr.mxu0 0.0
    %519 = vmatpush1.msra.mxu0 0.0
    %520 = vmatprep.subr.mxu0 0.0
    %521 = vmatpush1.msra.mxu0 0.0
    %522 = vmatprep.subr.mxu0 0.0
    %523 = vmatpush1.msra.mxu0 0.0
    %524 = vmatprep.subr.mxu0 0.0
    %525 = vmatpush1.msra.mxu0 0.0
    %526 = vmatprep.subr.mxu0 0.0
    %527 = vmatpush1.msra.mxu0 0.0
    %528 = vmatprep.subr.mxu0 0.0
    %529 = vmatpush1.msra.mxu0 0.0
    %530 = vmatprep.subr.mxu0 0.0
    %531 = vmatpush1.msra.mxu0 0.0
    %532 = vmatprep.subr.mxu0 0.0
    %533 = vmatpush1.msra.mxu0 0.0
    %534 = vmatprep.subr.mxu0 0.0
    %535 = vmatpush1.msra.mxu0 0.0
    %536 = vmatprep.subr.mxu0 0.0
    %537 = vmatpush1.msra.mxu0 0.0
    %538 = vmatprep.subr.mxu0 0.0
    %539 = vmatpush1.msra.mxu0 0.0
    %540 = vmatprep.subr.mxu0 0.0
    %541 = vmatpush1.msra.mxu0 0.0
    %542 = vmatprep.subr.mxu0 0.0
    %543 = vmatpush1.msra.mxu0 0.0
    %544 = vmatprep.subr.mxu0 0.0
    %545 = vmatpush1.msra.mxu0 0.0
    %546 = vmatprep.subr.mxu0 0.0
    %547 = vmatpush1.msra.mxu0 0.0
    %548 = vmatprep.subr.mxu0 0.0
    %549 = vmatpush1.msra.mxu0 0.0
    %550 = vmatprep.mubr.f32.mxu0 0.0
    %551 = vmatmul.mubr.f32.gmra.mrb[0].mxu0 %v256
    %v552 = vpop.f32.mrb[0].mxu0
    %v553 = vadd.f32 0.0, %v552
    %v554 = vpop.f32.mrb[0].mxu0
    %v555 = vadd.f32 0.0, %v554
    %556 = vdwg.mxu0
    %557 = vst [vmem:[#allocation8 + $0x10] sm:$0xff] %v553
    %558 = vst [vmem:[#allocation8 + $0x18] sm:$0xff] %v555
    %v559 = vadd.f32 %v553, %v555
    %560 = vadd.xlane.f32.xlu0 %v559
    %v561 = vpop.xlane.xlu0 %560
    %v562 = vadd.f32 %v341, %v561
    %v563 = vmul.f32 %v553, %v553
    %v564 = vmul.f32 %v555, %v555
    %v565 = vadd.f32 %v563, %v564
    %566 = vadd.xlane.f32.xlu0 %v565
    %v567 = vpop.xlane.xlu0 %566
    %v568 = vadd.f32 %v347, %v567
    %v569 = vmul.f32 %v562, 0.001953125
    %v570 = vmul.f32 %v568, 0.001953125
    %v571 = vmul.f32 %v569, %v569
    %v572 = vsub.f32 %v570, %v571
    %v573 = vld [vmem:[%s3] sm:$0xff]
    %v574 = vadd.f32 %v572, 1e-05
    %v575 = vrsqrt.pop %v574
    %v576 = vmul.f32 %v573, %v575
    %v577 = vld [vmem:[%s4] sm:$0xff]
    %v578 = vmul.f32 %v569, %v576
    %v579 = vsub.f32 %v577, %v578
    %v580 = vld [vmem:[#allocation8] sm:$0xff]
    %v581 = vld [vmem:[#allocation8 + $0x8] sm:$0xff]
    %583 = vset.pattern.permute.xlu0 0
    %584 = vperm.xlu0 %583, %v576
    %v585 = vpop.permute.xlu0 %584
    %v587 = vmul.f32 %v580, %v585
    %v588 = vmul.f32 %v581, %v585
    %590 = vset.pattern.permute.xlu0 0
    %591 = vperm.xlu0 %590, %v579
    %v592 = vpop.permute.xlu0 %591
    %v594 = vadd.f32 %v587, %v592
    %v595 = vadd.f32 %v588, %v592
    %v596 = vmax.f32 %v594, 0.0
    %v597 = vmax.f32 %v595, 0.0
    %598 = vst [vmem:[#allocation8] sm:$0xff] %v596
    %599 = vst [vmem:[#allocation8 + $0x8] sm:$0xff] %v597
    %v600 = vld [vmem:[#allocation8 + $0x10] sm:$0xff]
    %v601 = vld [vmem:[#allocation8 + $0x18] sm:$0xff]
    %v602 = vmul.f32 %v600, %v585
    %v603 = vmul.f32 %v601, %v585
    %v604 = vadd.f32 %v602, %v592
    %v605 = vadd.f32 %v603, %v592
    %v606 = vmax.f32 %v604, 0.0
    %v607 = vmax.f32 %v605, 0.0
    %608 = vst [vmem:[#allocation8 + $0x10] sm:$0xff] %v606
    %609 = vst [vmem:[#allocation8 + $0x18] sm:$0xff] %v607
    // Predicated region
    $region30: #{tpu_custom_call.1} parent=1 // pred_check
      _
    $region31: #{tpu_custom_call.1} parent=1 // pred_check_branch
      %611 = sbr.rel (0) target = $region33
    $region32: #{tpu_custom_call.1} parent=1 // pred_region
      %s613 = ssub.s32 512, 512
      %614 = vsyncadd [#allocation5], %s613
      %s615 = sshll.u32 [#allocation8], 4
      %s616 = int_to_ptr.vmem [resolvable:$true] %s615
      %621 = dma.vmem_to_hbm [thread:$0]  %s616, 512, %s5, [#allocation5], 256, 256, 16
    $region33: #{tpu_custom_call.1} parent=1 // pred_fallthru
      _
    // Predicated region
    $region34: #{tpu_custom_call.1} parent=1 // pred_check
      _
    $region35: #{tpu_custom_call.1} parent=1 // pred_check_branch
      %623 = sbr.rel (0) target = $region37
    $region36: #{tpu_custom_call.1} parent=1 // pred_region
      %624 = dma.done [#allocation5], 512
    $region37: #{tpu_custom_call.1} parent=1 // pred_fallthru
      _
    %625 = vsyncpa [#allocation4], 1
    %626 = vsyncpa [#allocation7], 1
    %627 = vsyncpa [#allocation5], 1

</llo_original>
